<compile_context>
chip_gen: v5e
topology: v5e:2x2
jax: 0.10.0
libtpu: 0.0.40
codegen_flags: <defaults>
</compile_context>

<pallas_src>
import functools

import jax
import jax.numpy as jnp
from jax.experimental import pallas as pl
from jax.experimental.pallas import tpu as pltpu


def _head_kernel(m1_ref, m2_ref, wfc_ref, wl_ref, bl_ref, out_ref, acc_ref, *, inv_len):
    # m1_ref, m2_ref : (TB, TL, H)   encoder output blocks
    # wfc_ref        : (H, E)        fc.weight^T (resident)
    # wl_ref         : (1, E)        hidden2label.weight (resident)
    # bl_ref         : (1, 1) SMEM   hidden2label.bias
    # out_ref        : (TB, 1)
    # acc_ref        : (TB, H) f32   scratch accumulator (sum over L of m1 - m2)
    l = pl.program_id(1)

    @pl.when(l == 0)
    def _():
        acc_ref[...] = jnp.zeros_like(acc_ref)

    # Stream & accumulate: sum_L (memory - memory2). This is the only large
    # HBM traffic; everything else happens once per (TB) output tile.
    diff = m1_ref[...].astype(jnp.float32) - m2_ref[...].astype(jnp.float32)
    acc_ref[...] += jnp.sum(diff, axis=1)

    @pl.when(l == pl.num_programs(1) - 1)
    def _():
        # mean(m1) - mean(m2)
        d_mean = acc_ref[...] * inv_len                                  # (TB, H)
        # fc(v1) - fc(v2) == (v1 - v2) @ W_fc^T  (bias cancels under subtraction)
        abs_dist = jnp.abs(
            jnp.dot(d_mean, wfc_ref[...], preferred_element_type=jnp.float32)
        )                                                                # (TB, E)
        # hidden2label: E -> 1 as VPU mul + lane reduce (avoid N=1 MXU matmul)
        logits = jnp.sum(abs_dist * wl_ref[...], axis=-1, keepdims=True) + bl_ref[0, 0]
        out_ref[...] = jax.nn.sigmoid(logits)                            # (TB, 1)


def _round_up(x, m):
    return ((x + m - 1) // m) * m


def tptrans_head(memory, memory2, w_fc, b_fc, w_label, b_label, *, tb=8, tl=128):
    """memory, memory2: (B, L, H) float (f32 or bf16).
    w_fc: (E, H) PyTorch-layout fc.weight ; b_fc: (E,) (cancels, unused)
    w_label: (1, E) PyTorch-layout hidden2label.weight ; b_label: (1,)
    Returns (B,) f32 — matches .squeeze(1) of the torch output."""
    B, L, H = memory.shape
    E = w_fc.shape[0]
    del b_fc  # fc bias cancels exactly in fc(v1) - fc(v2)

    # Tile sizing: TB multiple of 8 (output block constraint), TL multiple of 8.
    tb = max(8, _round_up(tb, 8))
    tl = max(8, min(_round_up(tl, 8), _round_up(L, 8)))
    B_pad = _round_up(B, tb)
    L_pad = _round_up(L, tl)

    def pad(x):
        if B_pad == B and L_pad == L:
            return x
        # zero padding along L adds 0 to the sum; padded B rows are sliced off.
        return jnp.pad(x, ((0, B_pad - B), (0, L_pad - L), (0, 0)))

    m1 = pad(memory)
    m2 = pad(memory2)

    wfc_t = jnp.transpose(w_fc).astype(jnp.float32)      # (H, E)
    wl_row = w_label.reshape(1, E).astype(jnp.float32)   # (1, E)
    bl = b_label.reshape(1, 1).astype(jnp.float32)       # (1, 1) scalar -> SMEM

    grid = (B_pad // tb, L_pad // tl)
    kernel = functools.partial(_head_kernel, inv_len=1.0 / L)

    out = pl.pallas_call(
        kernel,
        out_shape=jax.ShapeDtypeStruct((B_pad, 1), jnp.float32),
        grid_spec=pltpu.PrefetchScalarGridSpec(
            num_scalar_prefetch=0,
            grid=grid,
            in_specs=[
                pl.BlockSpec((tb, tl, H), lambda b, l: (b, l, 0)),     # memory
                pl.BlockSpec((tb, tl, H), lambda b, l: (b, l, 0)),     # memory2
                pl.BlockSpec((H, E), lambda b, l: (0, 0)),             # W_fc^T (resident)
                pl.BlockSpec((1, E), lambda b, l: (0, 0)),             # W_label (resident)
                pl.BlockSpec(memory_space=pltpu.MemorySpace.SMEM),     # b_label scalar
            ],
            out_specs=pl.BlockSpec((tb, 1), lambda b, l: (b, 0)),      # resident over L
            scratch_shapes=[pltpu.VMEM((tb, H), jnp.float32)],
        ),
        compiler_params=pltpu.CompilerParams(
            dimension_semantics=("parallel", "arbitrary")),
    )(m1, m2, wfc_t, wl_row, bl)

    return out[:B, 0]  # .squeeze(1)


def _reference(memory, memory2, w_fc, b_fc, w_label, b_label):
    v1 = jnp.mean(memory.astype(jnp.float32), axis=1)
    v2 = jnp.mean(memory2.astype(jnp.float32), axis=1)
    f1 = v1 @ w_fc.T + b_fc
    f2 = v2 @ w_fc.T + b_fc
    abs_dist = jnp.abs(f1 - f2)
    logits = abs_dist @ w_label.T + b_label
    return jax.nn.sigmoid(logits)[:, 0]


if __name__ == "__main__":
    def make_inputs(seed, B, L, H, E):
        key = jax.random.PRNGKey(seed)
        k1, k2, k3, k4, k5, k6 = jax.random.split(key, 6)
        memory = jax.random.normal(k1, (B, L, H), dtype=jnp.float32)
        memory2 = jax.random.normal(k2, (B, L, H), dtype=jnp.float32)
        w_fc = jax.random.normal(k3, (E, H), dtype=jnp.float32) * (1.0 / jnp.sqrt(H))
        b_fc = jax.random.normal(k4, (E,), dtype=jnp.float32) * 0.01
        w_label = jax.random.normal(k5, (1, E), dtype=jnp.float32) * (1.0 / jnp.sqrt(E))
        b_label = jax.random.normal(k6, (1,), dtype=jnp.float32) * 0.01
        return memory, memory2, w_fc, b_fc, w_label, b_label

    # 1) Small shapes consistent with the module (args.hidden=H, args.embedding_size=E).
    args1 = make_inputs(0, B=2, L=8, H=32, E=32)
    out1 = jax.block_until_ready(tptrans_head(*args1))
    ref1 = _reference(*args1)
    assert out1.shape == (2,)
    assert jnp.allclose(out1, ref1, atol=1e-5, rtol=1e-5)

    # 2) Non-divisible shapes + multi-step L accumulation (exercises padding/grid).
    args2 = make_inputs(1, B=3, L=20, H=32, E=32)
    out2 = jax.block_until_ready(tptrans_head(*args2, tb=8, tl=8))
    ref2 = _reference(*args2)
    assert out2.shape == (3,)
    assert jnp.allclose(out2, ref2, atol=1e-5, rtol=1e-5)

    print("KERNEL_OK")
</pallas_src>

<mosaic_0001>
module attributes {stable_mosaic.version = 11 : i64} {
  func.func @_head_kernel(%arg0: i32, %arg1: i32, %arg2: memref<8x8x32xf32, #tpu.memory_space<vmem>>, %arg3: memref<8x8x32xf32, #tpu.memory_space<vmem>>, %arg4: memref<32x32xf32, #tpu.memory_space<vmem>>, %arg5: memref<1x32xf32, #tpu.memory_space<vmem>>, %arg6: memref<1x1xf32, #tpu.memory_space<smem>>, %arg7: memref<8x1xf32, #tpu.memory_space<vmem>>, %arg8: memref<8x32xf32, #tpu.memory_space<vmem>>) attributes {dimension_semantics = [#tpu.dimension_semantics<parallel>, #tpu.dimension_semantics<arbitrary>], iteration_bounds = array<i64: 1, 1>, scalar_prefetch = 0 : i64, scratch_operands = 1 : i64, tpu.core_type = #tpu.core_type<tc>, window_params = [{transform_indices = @transform_0, window_bounds = array<i64: 8, 8, 32>}, {transform_indices = @transform_1, window_bounds = array<i64: 8, 8, 32>}, {pipeline_mode = #tpu.pipeline_mode<synchronous>, transform_indices = @transform_2, window_bounds = array<i64: 32, 32>}, {pipeline_mode = #tpu.pipeline_mode<synchronous>, transform_indices = @transform_3, window_bounds = array<i64: 1, 32>}, {transform_indices = @transform_4, window_bounds = array<i64: 1, 1>}, {transform_indices = @transform_5, window_bounds = array<i64: 8, 1>}]} {
    %c0_i32 = arith.constant 0 : i32
    %0 = arith.cmpi eq, %arg1, %c0_i32 : i32
    %1 = arith.extui %0 : i1 to i32
    %c0_i32_0 = arith.constant 0 : i32
    %2 = arith.cmpi ne, %1, %c0_i32_0 : i32
    scf.if %2 {
      %cst_12 = arith.constant 0.000000e+00 : f32
      %13 = vector.broadcast %cst_12 : f32 to vector<8x32xf32>
      %c0_13 = arith.constant 0 : index
      %c0_14 = arith.constant 0 : index
      %14 = vector.load %arg8[%c0_13, %c0_14] : memref<8x32xf32, #tpu.memory_space<vmem>>, vector<8x32xf32>
      tpu.vector_store %arg8[%c0_13, %c0_14], %13 {strides = array<i32>} : memref<8x32xf32, #tpu.memory_space<vmem>>, vector<8x32xf32>,
    } else {
    }
    %c0 = arith.constant 0 : index
    %c0_1 = arith.constant 0 : index
    %c0_2 = arith.constant 0 : index
    %3 = vector.load %arg2[%c0, %c0_1, %c0_2] : memref<8x8x32xf32, #tpu.memory_space<vmem>>, vector<8x8x32xf32>
    %c0_3 = arith.constant 0 : index
    %c0_4 = arith.constant 0 : index
    %c0_5 = arith.constant 0 : index
    %4 = vector.load %arg3[%c0_3, %c0_4, %c0_5] : memref<8x8x32xf32, #tpu.memory_space<vmem>>, vector<8x8x32xf32>
    %5 = arith.subf %3, %4 : vector<8x8x32xf32>
    %c0_6 = arith.constant 0 : index
    %c0_7 = arith.constant 0 : index
    %6 = vector.load %arg8[%c0_6, %c0_7] : memref<8x32xf32, #tpu.memory_space<vmem>>, vector<8x32xf32>
    %cst = arith.constant dense<0.000000e+00> : vector<8x32xf32>
    %7 = vector.multi_reduction <add>, %5, %cst [1] : vector<8x8x32xf32> to vector<8x32xf32>
    %8 = arith.addf %6, %7 : vector<8x32xf32>
    %c0_8 = arith.constant 0 : index
    %c0_9 = arith.constant 0 : index
    %9 = vector.load %arg8[%c0_8, %c0_9] : memref<8x32xf32, #tpu.memory_space<vmem>>, vector<8x32xf32>
    tpu.vector_store %arg8[%c0_8, %c0_9], %8 {strides = array<i32>} : memref<8x32xf32, #tpu.memory_space<vmem>>, vector<8x32xf32>,
    %c0_i32_10 = arith.constant 0 : i32
    %10 = arith.cmpi eq, %arg1, %c0_i32_10 : i32
    %11 = arith.extui %10 : i1 to i32
    %c0_i32_11 = arith.constant 0 : i32
    %12 = arith.cmpi ne, %11, %c0_i32_11 : i32
    scf.if %12 {
      %c0_12 = arith.constant 0 : index
      %c0_13 = arith.constant 0 : index
      %13 = vector.load %arg8[%c0_12, %c0_13] : memref<8x32xf32, #tpu.memory_space<vmem>>, vector<8x32xf32>
      %cst_14 = arith.constant 1.250000e-01 : f32
      %14 = vector.broadcast %cst_14 : f32 to vector<8x32xf32>
      %15 = arith.mulf %13, %14 : vector<8x32xf32>
      %c0_15 = arith.constant 0 : index
      %c0_16 = arith.constant 0 : index
      %16 = vector.load %arg4[%c0_15, %c0_16] : memref<32x32xf32, #tpu.memory_space<vmem>>, vector<32x32xf32>
      %cst_17 = arith.constant dense<0.000000e+00> : vector<8x32xf32>
      %17 = tpu.matmul %15, %16, %cst_17 {dimension_numbers = #tpu.dot_dimension_numbers<[1], [0], [0], [1], [0, 0, 1, 1], [], []>} : vector<8x32xf32>, vector<32x32xf32>, vector<8x32xf32> -> vector<8x32xf32>
      %18 = math.absf %17 : vector<8x32xf32>
      %c0_18 = arith.constant 0 : index
      %c0_19 = arith.constant 0 : index
      %19 = vector.load %arg5[%c0_18, %c0_19] : memref<1x32xf32, #tpu.memory_space<vmem>>, vector<1x32xf32>
      %20 = vector.broadcast %19 : vector<1x32xf32> to vector<8x32xf32>
      %21 = arith.mulf %18, %20 : vector<8x32xf32>
      %cst_20 = arith.constant dense<0.000000e+00> : vector<8xf32>
      %22 = vector.multi_reduction <add>, %21, %cst_20 [1] : vector<8x32xf32> to vector<8xf32>
      %23 = vector.shape_cast %22 : vector<8xf32> to vector<8x1xf32>
      %c0_21 = arith.constant 0 : index
      %c0_22 = arith.constant 0 : index
      %24 = memref.load %arg6[%c0_21, %c0_22] : memref<1x1xf32, #tpu.memory_space<smem>>
      %25 = vector.broadcast %24 : f32 to vector<8x1xf32>
      %26 = arith.addf %23, %25 : vector<8x1xf32>
      %27 = arith.negf %26 : vector<8x1xf32>
      %28 = math.exp %27 : vector<8x1xf32>
      %cst_23 = arith.constant 1.000000e+00 : f32
      %29 = vector.broadcast %cst_23 : f32 to vector<8x1xf32>
      %30 = arith.addf %29, %28 : vector<8x1xf32>
      %31 = arith.divf %29, %30 : vector<8x1xf32>
      %c0_24 = arith.constant 0 : index
      %c0_25 = arith.constant 0 : index
      %32 = vector.load %arg7[%c0_24, %c0_25] : memref<8x1xf32, #tpu.memory_space<vmem>>, vector<8x1xf32>
      tpu.vector_store %arg7[%c0_24, %c0_25], %31 {strides = array<i32>} : memref<8x1xf32, #tpu.memory_space<vmem>>, vector<8x1xf32>,
    } else {
    }
    return
  }
  func.func @transform_0(%arg0: i32, %arg1: i32) -> (i32, i32, i32) {
    %c0_i32 = arith.constant 0 : i32
    %c0_i32_0 = arith.constant 0 : i32
    return %arg0, %arg1, %c0_i32 : i32, i32, i32
  }
  func.func @transform_1(%arg0: i32, %arg1: i32) -> (i32, i32, i32) {
    %c0_i32 = arith.constant 0 : i32
    %c0_i32_0 = arith.constant 0 : i32
    return %arg0, %arg1, %c0_i32 : i32, i32, i32
  }
  func.func @transform_2(%arg0: i32, %arg1: i32) -> (i32, i32) {
    %c0_i32 = arith.constant 0 : i32
    %c0_i32_0 = arith.constant 0 : i32
    %c0_i32_1 = arith.constant 0 : i32
    return %c0_i32, %c0_i32_0 : i32, i32
  }
  func.func @transform_3(%arg0: i32, %arg1: i32) -> (i32, i32) {
    %c0_i32 = arith.constant 0 : i32
    %c0_i32_0 = arith.constant 0 : i32
    %c0_i32_1 = arith.constant 0 : i32
    return %c0_i32, %c0_i32_0 : i32, i32
  }
  func.func @transform_4(%arg0: i32, %arg1: i32) -> (i32, i32) {
    %c0_i32 = arith.constant 0 : i32
    %c0_i32_0 = arith.constant 0 : i32
    %c0_i32_1 = arith.constant 0 : i32
    return %c0_i32, %c0_i32_0 : i32, i32
  }
  func.func @transform_5(%arg0: i32, %arg1: i32) -> (i32, i32) {
    %c0_i32 = arith.constant 0 : i32
    %c0_i32_0 = arith.constant 0 : i32
    return %arg0, %c0_i32 : i32, i32
  }
}

</mosaic_0001>

<llo_original>
// kernel: tpu_custom_call.1
$region0: #{tpu_custom_call.1}
  #allocation0 [shape = 'u32[]', space=smem, size = 0x4, offset = 0x4, fixed_abs, tag = 'smem constant byte address 0x4 - core index']
  #allocation1 [shape = 'u32[72,128]{1,0:T(1,128)}', space=vmem, size = 0x9000, scoped, tag = 'internal scratch']
  #allocation2 [shape = 'f32[8,32]{1,0:T(8,128)}', space=vmem, size = 0x1000, scoped, tag = 'scratch operand']
  #allocation3 [shape = 'f32[1,1]{1,0:T(1,128)S(6)}', space=smem, size = 0x200, scoped, tag = 'scoped memory for tpu_custom_call.1']
  %s0 = inlined_call_operand.hbm [shape: f32[8,8,32], index: 0, kind: input, shape index: {}]
  %s1 = inlined_call_operand.hbm [shape: f32[8,8,32], index: 1, kind: input, shape index: {}]
  %s2 = inlined_call_operand.hbm [shape: f32[32,32], index: 2, kind: input, shape index: {}]
  %s3 = inlined_call_operand.vmem [shape: f32[1,32], index: 3, kind: input, shape index: {}]
  %s4 = inlined_call_operand.<no memory space> [shape: f32[1,1], index: 4, kind: input, shape index: {}]
  %s5 = inlined_call_operand.vmem [shape: f32[8,1], index: 5, kind: output, shape index: {}]
  %s6 = sld [smem:[#allocation0]]
  $region50: #{tpu_custom_call.1} parent=0
    _
  %s8 = ssub.s32 1, %s6
  %s9 = scalar_select 0, %s8, %s6
  %10 = sst [smem:[#allocation3]] %s4
  $region1: #{tpu_custom_call.1} parent=0
    #allocation4 [shape = 'u8[32768]{0}', space=vmem, size = 0x8000, scoped, tag = 'input window, operand 0, single buffered']
    #allocation5 [shape = 's32[1]{0}', space=sflag, size = 0x4, scoped, tag = 'scoped memory for tpu_custom_call.1']
    #allocation6 [shape = 'u8[32768]{0}', space=vmem, size = 0x8000, scoped, tag = 'input window, operand 1, single buffered']
    #allocation7 [shape = 's32[1]{0}', space=sflag, size = 0x4, scoped, tag = 'scoped memory for tpu_custom_call.1']
    #allocation8 [shape = 'u8[16384]{0}', space=vmem, size = 0x4000, scoped, tag = 'input window, operand 2, single buffered']
    %11 = vsyncpa [#allocation5], 0
    %12 = vsyncpa [#allocation7], 0
    // Predicated region
    $region2: #{tpu_custom_call.1} parent=1 // pred_check
      _
    $region3: #{tpu_custom_call.1} parent=1 // pred_check_branch
      %14 = sbr.rel (0) target = $region5
    $region4: #{tpu_custom_call.1} parent=1 // pred_region
      %16 = vsyncadd [#allocation5], 0
      %s17 = sshll.u32 %s0, 4
      %s18 = int_to_ptr.hbm [resolvable:$true] %s17
      %s19 = sshll.u32 [#allocation4], 4
      %s20 = int_to_ptr.vmem [resolvable:$true] %s19
      %25 = dma.hbm_to_vmem [thread:$0]  %s18, 1024, %s20, [#allocation5], 128, 128, 8
    $region5: #{tpu_custom_call.1} parent=1 // pred_fallthru
      _
    // Predicated region
    $region6: #{tpu_custom_call.1} parent=1 // pred_check
      _
    $region7: #{tpu_custom_call.1} parent=1 // pred_check_branch
      %27 = sbr.rel (0) target = $region9
    $region8: #{tpu_custom_call.1} parent=1 // pred_region
      %29 = vsyncadd [#allocation7], 0
      %s30 = sshll.u32 %s1, 4
      %s31 = int_to_ptr.hbm [resolvable:$true] %s30
      %s32 = sshll.u32 [#allocation6], 4
      %s33 = int_to_ptr.vmem [resolvable:$true] %s32
      %38 = dma.hbm_to_vmem [thread:$0]  %s31, 1024, %s33, [#allocation7], 128, 128, 8
    $region9: #{tpu_custom_call.1} parent=1 // pred_fallthru
      _
    // Predicated region
    $region10: #{tpu_custom_call.1} parent=1 // pred_check
      _
    $region11: #{tpu_custom_call.1} parent=1 // pred_check_branch
      %40 = sbr.rel (0) target = $region13
    $region12: #{tpu_custom_call.1} parent=1 // pred_region
      %42 = vsyncadd [#allocation7], 0
      %s43 = sshll.u32 %s2, 4
      %s44 = int_to_ptr.hbm [resolvable:$true] %s43
      %s45 = sshll.u32 [#allocation8], 4
      %s46 = int_to_ptr.vmem [resolvable:$true] %s45
      %51 = dma.hbm_to_vmem [thread:$0]  %s44, 512, %s46, [#allocation7], 128, 128, 8
    $region13: #{tpu_custom_call.1} parent=1 // pred_fallthru
      _
    // Predicated region
    $region14: #{tpu_custom_call.1} parent=1 // pred_check
      _
    $region15: #{tpu_custom_call.1} parent=1 // pred_check_branch
      %53 = sbr.rel (0) target = $region17
    $region16: #{tpu_custom_call.1} parent=1 // pred_region
      _
    $region17: #{tpu_custom_call.1} parent=1 // pred_fallthru
      _
    // Predicated region
    $region18: #{tpu_custom_call.1} parent=1 // pred_check
      _
    $region19: #{tpu_custom_call.1} parent=1 // pred_check_branch
      %55 = sbr.rel (0) target = $region21
    $region20: #{tpu_custom_call.1} parent=1 // pred_region
      _
    $region21: #{tpu_custom_call.1} parent=1 // pred_fallthru
      _
    // Predicated region
    $region22: #{tpu_custom_call.1} parent=1 // pred_check
      _
    $region23: #{tpu_custom_call.1} parent=1 // pred_check_branch
      %57 = sbr.rel (0) target = $region25
    $region24: #{tpu_custom_call.1} parent=1 // pred_region
      %59 = dma.done [#allocation5], 1024
    $region25: #{tpu_custom_call.1} parent=1 // pred_fallthru
      _
    // Predicated region
    $region26: #{tpu_custom_call.1} parent=1 // pred_check
      _
    $region27: #{tpu_custom_call.1} parent=1 // pred_check_branch
      %61 = sbr.rel (0) target = $region29
    $region28: #{tpu_custom_call.1} parent=1 // pred_region
      %63 = dma.done [#allocation7], 1024
    $region29: #{tpu_custom_call.1} parent=1 // pred_fallthru
      _
    // Predicated region
    $region30: #{tpu_custom_call.1} parent=1 // pred_check
      _
    $region31: #{tpu_custom_call.1} parent=1 // pred_check_branch
      %65 = sbr.rel (0) target = $region33
    $region32: #{tpu_custom_call.1} parent=1 // pred_region
      %67 = dma.done [#allocation7], 512
    $region33: #{tpu_custom_call.1} parent=1 // pred_fallthru
      _
    %p68 = scmp.eq.s32.totalorder 0, 0
    // Predicated region
    $region34: #{tpu_custom_call.1} parent=1 // pred_check
      %p69 = pneg %p68
    $region35: #{tpu_custom_call.1} parent=1 // pred_check_branch
      %71 = sbr.rel (%p69) target = $region37
    $region36: #{tpu_custom_call.1} parent=1 // pred_region
      %vm72 = vcmask 261120
      %73 = vst.msk [vmem:[#allocation2] sm:$0xff] %vm72, 0.0
    $region37: #{tpu_custom_call.1} parent=1 // pred_fallthru
      _
    %v74 = vld [vmem:[#allocation4] sm:$0xff]
    %v75 = vld [vmem:[#allocation4 + $0x8] sm:$0xff]
    %v76 = vld [vmem:[#allocation4 + $0x10] sm:$0xff]
    %v77 = vld [vmem:[#allocation4 + $0x18] sm:$0xff]
    %v78 = vld [vmem:[#allocation4 + $0x20] sm:$0xff]
    %v79 = vld [vmem:[#allocation4 + $0x28] sm:$0xff]
    %v80 = vld [vmem:[#allocation4 + $0x30] sm:$0xff]
    %v81 = vld [vmem:[#allocation4 + $0x38] sm:$0xff]
    %v82 = vld [vmem:[#allocation6] sm:$0xff]
    %v83 = vld [vmem:[#allocation6 + $0x8] sm:$0xff]
    %v84 = vld [vmem:[#allocation6 + $0x10] sm:$0xff]
    %v85 = vld [vmem:[#allocation6 + $0x18] sm:$0xff]
    %v86 = vld [vmem:[#allocation6 + $0x20] sm:$0xff]
    %v87 = vld [vmem:[#allocation6 + $0x28] sm:$0xff]
    %v88 = vld [vmem:[#allocation6 + $0x30] sm:$0xff]
    %v89 = vld [vmem:[#allocation6 + $0x38] sm:$0xff]
    %v90 = vsub.f32 %v74, %v82
    %v91 = vsub.f32 %v75, %v83
    %v92 = vsub.f32 %v76, %v84
    %v93 = vsub.f32 %v77, %v85
    %v94 = vsub.f32 %v78, %v86
    %v95 = vsub.f32 %v79, %v87
    %v96 = vsub.f32 %v80, %v88
    %v97 = vsub.f32 %v81, %v89
    %v98 = vld [vmem:[#allocation2] sm:$0xff]
    %vm99 = vcmask 261120
    %v100 = vsel %vm99, %v90, 0.0
    %v101 = vrot.slane %v100, 4
    %v102 = vadd.f32 %v100, %v101
    %v103 = vrot.slane %v102, 2
    %v104 = vadd.f32 %v102, %v103
    %v105 = vrot.slane %v104, 1
    %v106 = vadd.f32 %v104, %v105
    %v107 = vsel %vm99, %v91, 0.0
    %v108 = vrot.slane %v107, 4
    %v109 = vadd.f32 %v107, %v108
    %v110 = vrot.slane %v109, 2
    %v111 = vadd.f32 %v109, %v110
    %v112 = vrot.slane %v111, 1
    %v113 = vadd.f32 %v111, %v112
    %v114 = vsel %vm99, %v92, 0.0
    %v115 = vrot.slane %v114, 4
    %v116 = vadd.f32 %v114, %v115
    %v117 = vrot.slane %v116, 2
    %v118 = vadd.f32 %v116, %v117
    %v119 = vrot.slane %v118, 1
    %v120 = vadd.f32 %v118, %v119
    %v121 = vsel %vm99, %v93, 0.0
    %v122 = vrot.slane %v121, 4
    %v123 = vadd.f32 %v121, %v122
    %v124 = vrot.slane %v123, 2
    %v125 = vadd.f32 %v123, %v124
    %v126 = vrot.slane %v125, 1
    %v127 = vadd.f32 %v125, %v126
    %v128 = vsel %vm99, %v94, 0.0
    %v129 = vrot.slane %v128, 4
    %v130 = vadd.f32 %v128, %v129
    %v131 = vrot.slane %v130, 2
    %v132 = vadd.f32 %v130, %v131
    %v133 = vrot.slane %v132, 1
    %v134 = vadd.f32 %v132, %v133
    %v135 = vsel %vm99, %v95, 0.0
    %v136 = vrot.slane %v135, 4
    %v137 = vadd.f32 %v135, %v136
    %v138 = vrot.slane %v137, 2
    %v139 = vadd.f32 %v137, %v138
    %v140 = vrot.slane %v139, 1
    %v141 = vadd.f32 %v139, %v140
    %v142 = vsel %vm99, %v96, 0.0
    %v143 = vrot.slane %v142, 4
    %v144 = vadd.f32 %v142, %v143
    %v145 = vrot.slane %v144, 2
    %v146 = vadd.f32 %v144, %v145
    %v147 = vrot.slane %v146, 1
    %v148 = vadd.f32 %v146, %v147
    %v149 = vsel %vm99, %v97, 0.0
    %v150 = vrot.slane %v149, 4
    %v151 = vadd.f32 %v149, %v150
    %v152 = vrot.slane %v151, 2
    %v153 = vadd.f32 %v151, %v152
    %v154 = vrot.slane %v153, 1
    %v155 = vadd.f32 %v153, %v154
    %vm164 = vcmask 1041409
    %v165 = vsel %vm164, %v113, %v106
    %vm166 = vcmask 1042434
    %v167 = vsel %vm166, %v120, %v165
    %vm168 = vcmask 1043459
    %v169 = vsel %vm168, %v127, %v167
    %vm170 = vcmask 1044484
    %v171 = vsel %vm170, %v134, %v169
    %vm172 = vcmask 1045509
    %v173 = vsel %vm172, %v141, %v171
    %vm174 = vcmask 1046534
    %v175 = vsel %vm174, %v148, %v173
    %vm176 = vcmask 1047559
    %v177 = vsel %vm176, %v155, %v175
    %v179 = vadd.f32 %v98, %v177
    %180 = vst.msk [vmem:[#allocation2] sm:$0xff] %vm99, %v179
    // Predicated region
    $region38: #{tpu_custom_call.1} parent=1 // pred_check
      %p181 = pneg %p68
    $region39: #{tpu_custom_call.1} parent=1 // pred_check_branch
      %183 = sbr.rel (%p181) target = $region41
    $region40: #{tpu_custom_call.1} parent=1 // pred_region
      %v184 = vld [vmem:[#allocation2] sm:$0xff]
      %v185 = vmul.f32 %v184, 0.125
      %v186 = vld [vmem:[#allocation8] sm:$0xff]
      %v187 = vld [vmem:[#allocation8 + $0x8] sm:$0xff]
      %v188 = vld [vmem:[#allocation8 + $0x10] sm:$0xff]
      %v189 = vld [vmem:[#allocation8 + $0x18] sm:$0xff]
      %v191 = vsel %vm99, %v185, 0
      %193 = vmatpush.msra.mxu0 0.0
      %194 = vmatpush.msra.mxu0 0.0
      %195 = vmatpush.msra.mxu0 0.0
      %196 = vmatpush.msra.mxu0 0.0
      %197 = vmatpush.msra.mxu0 0.0
      %198 = vmatpush.msra.mxu0 0.0
      %199 = vmatpush.msra.mxu0 0.0
      %200 = vmatpush.msra.mxu0 0.0
      %201 = vmatpush.msra.mxu0 0.0
      %202 = vmatpush.msra.mxu0 0.0
      %203 = vmatpush.msra.mxu0 0.0
      %204 = vmatpush.msra.mxu0 0.0
      %205 = vmatpush.msra.mxu0 %v189
      %206 = vmatpush.msra.mxu0 %v188
      %207 = vmatpush.msra.mxu0 %v187
      %208 = vmatpush.msra.mxu0 %v186
      %209 = vmatmul.f32.gmra.mxu0 %v191
      %v210 = vpop.f32.mrf.mxu0
      %v211 = vadd.f32 0.0, %v210
      %212 = vdwg.mxu0
      %v213 = vand.u32 2147483647, %v211
      %v214 = vld [vmem:[%s3] sm:$0x1]
      %v216 = vperm.slane %v214, 0
      %v218 = vmul.f32 %v213, %v216
      %v219 = vsel %vm99, %v218, 0.0
      %220 = vadd.xlane.f32.xlu0 %v219
      %v221 = vpop.xlane.xlu0 %220
      %s222 = sld [smem:[#allocation3]]
      %v223 = vstv %s222
      %v224 = vadd.f32 %v221, %v223
      %v225 = vxor.u32 %v224, 2147483648
      %v226 = vmul.f32 %v225, 1.442695
      %v227 = vpow.pop %v226
      %v228 = vadd.f32 %v227, 1.0
      %v229 = vrcp.pop %v228
      %v230 = vmul.f32 %v228, %v229
      %v231 = vsub.f32 1.0, %v230
      %v232 = vmul.f32 %v229, %v231
      %v233 = vadd.f32 %v229, %v232
      %vm234 = vweird.f32 %v228
      %vm235 = vweird.f32 %v229
      %vm236 = vmor %vm234, %vm235
      %v237 = vsel %vm236, %v229, %v233
      %v238 = vand.u32 2147483647, %v228
      %vm239 = vcmp.eq.f32.partialorder %v238, 8.507059e+37
      %v240 = vand.u32 %v228, 2147483648
      %v241 = vor.u32 1.1754944e-38, %v240
      %v242 = vsel %vm239, %v241, %v237
      %v243 = vmul.f32 1.0, %v242
      %vm244 = vcmask 7168
      %245 = vst.msk [vmem:[%s5] sm:$0xff] %vm244, %v243
    $region41: #{tpu_custom_call.1} parent=1 // pred_fallthru
      _
    // Predicated region
    $region42: #{tpu_custom_call.1} parent=1 // pred_check
      _
    $region43: #{tpu_custom_call.1} parent=1 // pred_check_branch
      %247 = sbr.rel (0) target = $region45
    $region44: #{tpu_custom_call.1} parent=1 // pred_region
      _
    $region45: #{tpu_custom_call.1} parent=1 // pred_fallthru
      _
    // Predicated region
    $region46: #{tpu_custom_call.1} parent=1 // pred_check
      _
    $region47: #{tpu_custom_call.1} parent=1 // pred_check_branch
      %249 = sbr.rel (0) target = $region49
    $region48: #{tpu_custom_call.1} parent=1 // pred_region
      _
    $region49: #{tpu_custom_call.1} parent=1 // pred_fallthru
      _
    %250 = vsyncpa [#allocation5], 1
    %251 = vsyncpa [#allocation7], 1

</llo_original>
